<compile_context>
chip_gen: v7x
topology: tpu7x:2x2x1
jax: 0.10.0
libtpu: 0.0.40
codegen_flags: <defaults>
</compile_context>

<pallas_src>
import functools
import math

import jax
import jax.numpy as jnp
import numpy as np
from jax import lax
from jax.experimental import pallas as pl
from jax.experimental.pallas import tpu as pltpu


def _erf_approx(x):
    # Abramowitz & Stegun 7.1.26 (|err| < 1.5e-7); uses only exp/abs/where.
    a1, a2, a3, a4, a5 = 0.254829592, -0.284496736, 1.421413741, -1.453152027, 1.061405429
    p = 0.3275911
    s = jnp.where(x >= 0.0, 1.0, -1.0)
    ax = jnp.abs(x)
    t = 1.0 / (1.0 + p * ax)
    poly = ((((a5 * t + a4) * t + a3) * t + a2) * t + a1) * t
    return s * (1.0 - poly * jnp.exp(-ax * ax))


def _gelu_exact(x):
    # torch.nn.functional.gelu default (erf-based, not tanh approximation).
    # TODO(synk): tanh-approx GELU would move more work to the EUP on v5e, but it
    #             changes numerics vs the torch default, so exact erf is kept.
    return 0.5 * x * (1.0 + _erf_approx(x * (1.0 / math.sqrt(2.0))))


def _layernorm(v, g, b, eps):
    mu = jnp.mean(v, axis=-1, keepdims=True)
    var = jnp.mean(jnp.square(v - mu), axis=-1, keepdims=True)
    return (v - mu) * lax.rsqrt(var + eps) * g + b


# ---------------- kernel 1: LayerNorm1 + QKV projection (row tiles) ----------------
def ln_qkv_kernel(x_ref, g1_ref, b1_ref,
                  wq_ref, wk_ref, wv_ref, bq_ref, bk_ref, bv_ref,
                  q_ref, k_ref, v_ref, *, eps):
    x = x_ref[...].astype(jnp.float32)                     # (TQ, H)
    cdt = wq_ref.dtype                                     # matmul compute dtype
    xn = _layernorm(x, g1_ref[...], b1_ref[...], eps).astype(cdt)
    # 1/sqrt(hd) is already folded into wq / bq by the wrapper.
    q = jnp.dot(xn, wq_ref[...], preferred_element_type=jnp.float32) + bq_ref[...]
    k = jnp.dot(xn, wk_ref[...], preferred_element_type=jnp.float32) + bk_ref[...]
    v = jnp.dot(xn, wv_ref[...], preferred_element_type=jnp.float32) + bv_ref[...]
    q_ref[...] = q.astype(q_ref.dtype)
    k_ref[...] = k.astype(k_ref.dtype)
    v_ref[...] = v.astype(v_ref.dtype)


# ---------------- kernel 2: causal attention, one (batch, head) per step ----------------
def attn_head_kernel(q_ref, k_ref, v_ref, ctx_ref):
    q = q_ref[...]                                         # (S, hd), compute dtype
    k = k_ref[...]
    v = v_ref[...]
    s = lax.dot_general(q, k, (((1,), (1,)), ((), ())),
                        preferred_element_type=jnp.float32)        # (S, S), f32
    S = s.shape[0]
    row = lax.broadcasted_iota(jnp.int32, (S, S), 0)
    col = lax.broadcasted_iota(jnp.int32, (S, S), 1)
    s = jnp.where(row >= col, s, -1e4)                     # is_decoder=True -> causal
    # numerically stable softmax; normalizer reciprocal on the EUP slot
    m = jnp.max(s, axis=-1, keepdims=True)
    e = jnp.exp(s - m)
    l = jnp.sum(e, axis=-1, keepdims=True)
    ctx = jnp.dot(e.astype(v.dtype), v, preferred_element_type=jnp.float32)
    ctx = ctx * pl.reciprocal(l, approx=True)
    ctx_ref[...] = ctx.astype(ctx_ref.dtype)


# ---------------- kernel 3: out-proj + residual + LayerNorm2 + MLP + residual ----------------
def out_mlp_kernel(x_ref, ctx_ref, wo_ref, bo_ref, g2_ref, b2_ref,
                   w1_ref, bm1_ref, w2_ref, bm2_ref, o_ref, *, eps):
    x = x_ref[...].astype(jnp.float32)                     # (TQ, H)
    cdt = wo_ref.dtype
    attn = jnp.dot(ctx_ref[...].astype(cdt), wo_ref[...],
                   preferred_element_type=jnp.float32) + bo_ref[...]
    h1 = x + attn                                          # residual (pre-LN)
    h1n = _layernorm(h1, g2_ref[...], b2_ref[...], eps)
    m = jnp.dot(h1n.astype(cdt), w1_ref[...],
                preferred_element_type=jnp.float32) + bm1_ref[...]
    m = _gelu_exact(m)
    m = jnp.dot(m.astype(cdt), w2_ref[...],
                preferred_element_type=jnp.float32) + bm2_ref[...]
    o_ref[...] = (h1 + m).astype(o_ref.dtype)


def _row_tile(S):
    # Largest friendly row tile that divides S; small S falls back to full extent
    # (block == array dim, so the (8,128) rule is still satisfied).
    for t in (512, 256, 128):
        if S % t == 0:
            return t
    return S


def block1d(x, params, *, num_heads, eps=1e-5, compute_dtype=jnp.bfloat16):
    B, S, H = x.shape
    assert H % num_heads == 0
    hd = H // num_heads
    scale = 1.0 / math.sqrt(hd)
    f32 = jnp.float32
    cdt = compute_dtype
    TQ = _row_tile(S)

    # ---- wrapper-side parameter prep (free layout plumbing) ----
    wqkv, bqkv = params["wqkv"], params["bqkv"]
    wq = (wqkv[:, :H] * scale).astype(cdt)     # fold softmax scale into Q projection
    wk = wqkv[:, H:2 * H].astype(cdt)
    wv = wqkv[:, 2 * H:].astype(cdt)
    bq = (bqkv[:, :H] * scale).astype(f32)
    bk = bqkv[:, H:2 * H].astype(f32)
    bv = bqkv[:, 2 * H:].astype(f32)

    g1 = params["g1"].astype(f32); b1 = params["b1"].astype(f32)
    g2 = params["g2"].astype(f32); b2 = params["b2"].astype(f32)
    wo = params["wo"].astype(cdt); bo = params["bo"].astype(f32)
    w1 = params["w1"].astype(cdt); bm1 = params["bm1"].astype(f32)
    w2 = params["w2"].astype(cdt); bm2 = params["bm2"].astype(f32)

    cparams = pltpu.CompilerParams(
        dimension_semantics=("parallel", "parallel"),
        vmem_limit_bytes=48 * 1024 * 1024)     # <= 48 MiB: safe on v5e/v6e/v7x

    row_spec = pl.BlockSpec((pl.Squeezed(), TQ, H), lambda b, t: (b, t, 0))

    def wspec(a):
        return pl.BlockSpec(a.shape, lambda b, t: (0, 0))

    # ---- 1) LN1 + QKV projection, tiled over (batch, row-tile) ----
    qkv_params = [g1, b1, wq, wk, wv, bq, bk, bv]
    q, k, v = pl.pallas_call(
        functools.partial(ln_qkv_kernel, eps=eps),
        out_shape=tuple(jax.ShapeDtypeStruct((B, S, H), cdt) for _ in range(3)),
        grid=(B, S // TQ),
        in_specs=[row_spec] + [wspec(a) for a in qkv_params],
        out_specs=(row_spec, row_spec, row_spec),
        compiler_params=cparams,
    )(x, *qkv_params)

    # heads -> leading axes: plain XLA layout plumbing outside the kernels
    def split_heads(t):
        return t.reshape(B, S, num_heads, hd).transpose(0, 2, 1, 3)

    qh, kh, vh = split_heads(q), split_heads(k), split_heads(v)

    # ---- 2) causal attention, one (batch, head) per grid step ----
    head_spec = pl.BlockSpec((pl.Squeezed(), pl.Squeezed(), S, hd),
                             lambda b, n: (b, n, 0, 0))
    ctx_h = pl.pallas_call(
        attn_head_kernel,
        out_shape=jax.ShapeDtypeStruct((B, num_heads, S, hd), cdt),
        grid=(B, num_heads),
        in_specs=[head_spec, head_spec, head_spec],
        out_specs=head_spec,
        compiler_params=cparams,
    )(qh, kh, vh)

    ctx = ctx_h.transpose(0, 2, 1, 3).reshape(B, S, H)

    # ---- 3) out-proj + residual + LN2 + MLP + residual, tiled over rows ----
    mlp_params = [wo, bo, g2, b2, w1, bm1, w2, bm2]
    out = pl.pallas_call(
        functools.partial(out_mlp_kernel, eps=eps),
        out_shape=jax.ShapeDtypeStruct((B, S, H), x.dtype),
        grid=(B, S // TQ),
        in_specs=[row_spec, row_spec] + [wspec(a) for a in mlp_params],
        out_specs=row_spec,
        compiler_params=cparams,
    )(x, ctx, *mlp_params)
    return out


def block1d_ref(x, p, *, num_heads, eps=1e-5):
    # pure-JAX reference mirroring the torch forward (f32)
    def ln(v, g, b):
        mu = v.mean(-1, keepdims=True)
        var = ((v - mu) ** 2).mean(-1, keepdims=True)
        return (v - mu) / jnp.sqrt(var + eps) * g + b

    B, S, H = x.shape
    hd = H // num_heads
    xn = ln(x, p["g1"][0], p["b1"][0])
    qkv = xn @ p["wqkv"] + p["bqkv"][0]
    q, k, v = jnp.split(qkv, 3, axis=-1)
    q = q.reshape(B, S, num_heads, hd).transpose(0, 2, 1, 3)
    k = k.reshape(B, S, num_heads, hd).transpose(0, 2, 1, 3)
    v = v.reshape(B, S, num_heads, hd).transpose(0, 2, 1, 3)
    s = (q @ jnp.swapaxes(k, -1, -2)) / math.sqrt(hd)
    causal = jnp.tril(jnp.ones((S, S), bool))
    s = jnp.where(causal, s, -1e4)
    attn = jax.nn.softmax(s, axis=-1)
    ctx = (attn @ v).transpose(0, 2, 1, 3).reshape(B, S, H)
    h1 = x + (ctx @ p["wo"] + p["bo"][0])
    h1n = ln(h1, p["g2"][0], p["b2"][0])
    m = jax.nn.gelu(h1n @ p["w1"] + p["bm1"][0], approximate=False)
    m = m @ p["w2"] + p["bm2"][0]
    return h1 + m


if __name__ == "__main__":
    B, S, H = 2, 8, 32
    num_heads = 4
    mlp_ratio = 4.0
    I = int(H * mlp_ratio)

    key = jax.random.PRNGKey(0)
    kx, *ks = jax.random.split(key, 9)
    f32 = jnp.float32
    params = {
        "g1": jnp.ones((1, H), f32),
        "b1": jnp.zeros((1, H), f32),
        "wqkv": 0.05 * jax.random.normal(ks[0], (H, 3 * H), f32),
        "bqkv": 0.05 * jax.random.normal(ks[1], (1, 3 * H), f32),
        "wo": 0.05 * jax.random.normal(ks[2], (H, H), f32),
        "bo": 0.05 * jax.random.normal(ks[3], (1, H), f32),
        "g2": jnp.ones((1, H), f32),
        "b2": jnp.zeros((1, H), f32),
        "w1": 0.05 * jax.random.normal(ks[4], (H, I), f32),
        "bm1": 0.05 * jax.random.normal(ks[5], (1, I), f32),
        "w2": 0.05 * jax.random.normal(ks[6], (I, H), f32),
        "bm2": 0.05 * jax.random.normal(ks[7], (1, H), f32),
    }
    x = jax.random.normal(kx, (B, S, H), f32)

    ref = block1d_ref(x, params, num_heads=num_heads)

    # f32 compute path: tight check of the kernel math.
    out_f32 = jax.block_until_ready(
        block1d(x, params, num_heads=num_heads, compute_dtype=jnp.float32))
    np.testing.assert_allclose(np.asarray(out_f32), np.asarray(ref),
                               rtol=2e-3, atol=2e-3)

    # bf16-matmul path (default; f32 accumulation / LayerNorm / softmax): looser check.
    out_bf16 = jax.block_until_ready(block1d(x, params, num_heads=num_heads))
    np.testing.assert_allclose(np.asarray(out_bf16), np.asarray(ref),
                               rtol=5e-2, atol=5e-2)

    print("KERNEL_OK")
</pallas_src>

<mosaic_0001>
module attributes {stable_mosaic.version = 11 : i64} {
  func.func @ln_qkv_kernel(%arg0: i32, %arg1: i32, %arg2: memref<1x8x32xf32, #tpu.memory_space<vmem>>, %arg3: memref<1x32xf32, #tpu.memory_space<vmem>>, %arg4: memref<1x32xf32, #tpu.memory_space<vmem>>, %arg5: memref<32x32xf32, #tpu.memory_space<vmem>>, %arg6: memref<32x32xf32, #tpu.memory_space<vmem>>, %arg7: memref<32x32xf32, #tpu.memory_space<vmem>>, %arg8: memref<1x32xf32, #tpu.memory_space<vmem>>, %arg9: memref<1x32xf32, #tpu.memory_space<vmem>>, %arg10: memref<1x32xf32, #tpu.memory_space<vmem>>, %arg11: memref<1x8x32xf32, #tpu.memory_space<vmem>>, %arg12: memref<1x8x32xf32, #tpu.memory_space<vmem>>, %arg13: memref<1x8x32xf32, #tpu.memory_space<vmem>>) attributes {dimension_semantics = [#tpu.dimension_semantics<parallel>, #tpu.dimension_semantics<parallel>], iteration_bounds = array<i64: 2, 1>, scalar_prefetch = 0 : i64, scratch_operands = 0 : i64, tpu.core_type = #tpu.core_type<tc>, window_params = [{transform_indices = @transform_0, window_bounds = array<i64: 1, 8, 32>}, {pipeline_mode = #tpu.pipeline_mode<synchronous>, transform_indices = @transform_1, window_bounds = array<i64: 1, 32>}, {pipeline_mode = #tpu.pipeline_mode<synchronous>, transform_indices = @transform_2, window_bounds = array<i64: 1, 32>}, {pipeline_mode = #tpu.pipeline_mode<synchronous>, transform_indices = @transform_3, window_bounds = array<i64: 32, 32>}, {pipeline_mode = #tpu.pipeline_mode<synchronous>, transform_indices = @transform_4, window_bounds = array<i64: 32, 32>}, {pipeline_mode = #tpu.pipeline_mode<synchronous>, transform_indices = @transform_5, window_bounds = array<i64: 32, 32>}, {pipeline_mode = #tpu.pipeline_mode<synchronous>, transform_indices = @transform_6, window_bounds = array<i64: 1, 32>}, {pipeline_mode = #tpu.pipeline_mode<synchronous>, transform_indices = @transform_7, window_bounds = array<i64: 1, 32>}, {pipeline_mode = #tpu.pipeline_mode<synchronous>, transform_indices = @transform_8, window_bounds = array<i64: 1, 32>}, {transform_indices = @transform_9, window_bounds = array<i64: 1, 8, 32>}, {transform_indices = @transform_10, window_bounds = array<i64: 1, 8, 32>}, {transform_indices = @transform_11, window_bounds = array<i64: 1, 8, 32>}]} {
    %c0 = arith.constant 0 : index
    %c0_0 = arith.constant 0 : index
    %c0_1 = arith.constant 0 : index
    %0 = vector.load %arg2[%c0, %c0_0, %c0_1] : memref<1x8x32xf32, #tpu.memory_space<vmem>>, vector<1x8x32xf32>
    %1 = vector.shape_cast %0 : vector<1x8x32xf32> to vector<8x32xf32>
    %c0_2 = arith.constant 0 : index
    %c0_3 = arith.constant 0 : index
    %2 = vector.load %arg3[%c0_2, %c0_3] : memref<1x32xf32, #tpu.memory_space<vmem>>, vector<1x32xf32>
    %c0_4 = arith.constant 0 : index
    %c0_5 = arith.constant 0 : index
    %3 = vector.load %arg4[%c0_4, %c0_5] : memref<1x32xf32, #tpu.memory_space<vmem>>, vector<1x32xf32>
    %cst = arith.constant dense<0.000000e+00> : vector<8xf32>
    %4 = vector.multi_reduction <add>, %1, %cst [1] : vector<8x32xf32> to vector<8xf32>
    %5 = vector.shape_cast %4 : vector<8xf32> to vector<8x1xf32>
    %cst_6 = arith.constant 3.200000e+01 : f32
    %6 = vector.broadcast %cst_6 : f32 to vector<8x1xf32>
    %7 = arith.divf %5, %6 : vector<8x1xf32>
    %8 = vector.broadcast %7 : vector<8x1xf32> to vector<8x32xf32>
    %9 = arith.subf %1, %8 : vector<8x32xf32>
    %10 = arith.mulf %9, %9 : vector<8x32xf32>
    %cst_7 = arith.constant dense<0.000000e+00> : vector<8xf32>
    %11 = vector.multi_reduction <add>, %10, %cst_7 [1] : vector<8x32xf32> to vector<8xf32>
    %12 = vector.shape_cast %11 : vector<8xf32> to vector<8x1xf32>
    %cst_8 = arith.constant 3.200000e+01 : f32
    %13 = vector.broadcast %cst_8 : f32 to vector<8x1xf32>
    %14 = arith.divf %12, %13 : vector<8x1xf32>
    %15 = vector.broadcast %7 : vector<8x1xf32> to vector<8x32xf32>
    %16 = arith.subf %1, %15 : vector<8x32xf32>
    %cst_9 = arith.constant 9.99999974E-6 : f32
    %17 = vector.broadcast %cst_9 : f32 to vector<8x1xf32>
    %18 = arith.addf %14, %17 : vector<8x1xf32>
    %19 = math.rsqrt %18 : vector<8x1xf32>
    %20 = vector.broadcast %19 : vector<8x1xf32> to vector<8x32xf32>
    %21 = arith.mulf %16, %20 : vector<8x32xf32>
    %22 = vector.broadcast %2 : vector<1x32xf32> to vector<8x32xf32>
    %23 = arith.mulf %21, %22 : vector<8x32xf32>
    %24 = vector.broadcast %3 : vector<1x32xf32> to vector<8x32xf32>
    %25 = arith.addf %23, %24 : vector<8x32xf32>
    %c0_10 = arith.constant 0 : index
    %c0_11 = arith.constant 0 : index
    %26 = vector.load %arg5[%c0_10, %c0_11] : memref<32x32xf32, #tpu.memory_space<vmem>>, vector<32x32xf32>
    %cst_12 = arith.constant dense<0.000000e+00> : vector<8x32xf32>
    %27 = tpu.matmul %25, %26, %cst_12 {dimension_numbers = #tpu.dot_dimension_numbers<[1], [0], [0], [1], [0, 0, 1, 1], [], []>} : vector<8x32xf32>, vector<32x32xf32>, vector<8x32xf32> -> vector<8x32xf32>
    %c0_13 = arith.constant 0 : index
    %c0_14 = arith.constant 0 : index
    %28 = vector.load %arg8[%c0_13, %c0_14] : memref<1x32xf32, #tpu.memory_space<vmem>>, vector<1x32xf32>
    %29 = vector.broadcast %28 : vector<1x32xf32> to vector<8x32xf32>
    %30 = arith.addf %27, %29 : vector<8x32xf32>
    %c0_15 = arith.constant 0 : index
    %c0_16 = arith.constant 0 : index
    %31 = vector.load %arg6[%c0_15, %c0_16] : memref<32x32xf32, #tpu.memory_space<vmem>>, vector<32x32xf32>
    %cst_17 = arith.constant dense<0.000000e+00> : vector<8x32xf32>
    %32 = tpu.matmul %25, %31, %cst_17 {dimension_numbers = #tpu.dot_dimension_numbers<[1], [0], [0], [1], [0, 0, 1, 1], [], []>} : vector<8x32xf32>, vector<32x32xf32>, vector<8x32xf32> -> vector<8x32xf32>
    %c0_18 = arith.constant 0 : index
    %c0_19 = arith.constant 0 : index
    %33 = vector.load %arg9[%c0_18, %c0_19] : memref<1x32xf32, #tpu.memory_space<vmem>>, vector<1x32xf32>
    %34 = vector.broadcast %33 : vector<1x32xf32> to vector<8x32xf32>
    %35 = arith.addf %32, %34 : vector<8x32xf32>
    %c0_20 = arith.constant 0 : index
    %c0_21 = arith.constant 0 : index
    %36 = vector.load %arg7[%c0_20, %c0_21] : memref<32x32xf32, #tpu.memory_space<vmem>>, vector<32x32xf32>
    %cst_22 = arith.constant dense<0.000000e+00> : vector<8x32xf32>
    %37 = tpu.matmul %25, %36, %cst_22 {dimension_numbers = #tpu.dot_dimension_numbers<[1], [0], [0], [1], [0, 0, 1, 1], [], []>} : vector<8x32xf32>, vector<32x32xf32>, vector<8x32xf32> -> vector<8x32xf32>
    %c0_23 = arith.constant 0 : index
    %c0_24 = arith.constant 0 : index
    %38 = vector.load %arg10[%c0_23, %c0_24] : memref<1x32xf32, #tpu.memory_space<vmem>>, vector<1x32xf32>
    %39 = vector.broadcast %38 : vector<1x32xf32> to vector<8x32xf32>
    %40 = arith.addf %37, %39 : vector<8x32xf32>
    %c0_25 = arith.constant 0 : index
    %c0_26 = arith.constant 0 : index
    %c0_27 = arith.constant 0 : index
    %41 = vector.load %arg11[%c0_25, %c0_26, %c0_27] : memref<1x8x32xf32, #tpu.memory_space<vmem>>, vector<1x8x32xf32>
    %42 = vector.shape_cast %41 : vector<1x8x32xf32> to vector<8x32xf32>
    %43 = vector.shape_cast %30 : vector<8x32xf32> to vector<1x8x32xf32>
    tpu.vector_store %arg11[%c0_25, %c0_26, %c0_27], %43 {strides = array<i32>} : memref<1x8x32xf32, #tpu.memory_space<vmem>>, vector<1x8x32xf32>,
    %c0_28 = arith.constant 0 : index
    %c0_29 = arith.constant 0 : index
    %c0_30 = arith.constant 0 : index
    %44 = vector.load %arg12[%c0_28, %c0_29, %c0_30] : memref<1x8x32xf32, #tpu.memory_space<vmem>>, vector<1x8x32xf32>
    %45 = vector.shape_cast %44 : vector<1x8x32xf32> to vector<8x32xf32>
    %46 = vector.shape_cast %35 : vector<8x32xf32> to vector<1x8x32xf32>
    tpu.vector_store %arg12[%c0_28, %c0_29, %c0_30], %46 {strides = array<i32>} : memref<1x8x32xf32, #tpu.memory_space<vmem>>, vector<1x8x32xf32>,
    %c0_31 = arith.constant 0 : index
    %c0_32 = arith.constant 0 : index
    %c0_33 = arith.constant 0 : index
    %47 = vector.load %arg13[%c0_31, %c0_32, %c0_33] : memref<1x8x32xf32, #tpu.memory_space<vmem>>, vector<1x8x32xf32>
    %48 = vector.shape_cast %47 : vector<1x8x32xf32> to vector<8x32xf32>
    %49 = vector.shape_cast %40 : vector<8x32xf32> to vector<1x8x32xf32>
    tpu.vector_store %arg13[%c0_31, %c0_32, %c0_33], %49 {strides = array<i32>} : memref<1x8x32xf32, #tpu.memory_space<vmem>>, vector<1x8x32xf32>,
    return
  }
  func.func @transform_0(%arg0: i32, %arg1: i32) -> (i32, i32, i32) {
    %c0_i32 = arith.constant 0 : i32
    %c0_i32_0 = arith.constant 0 : i32
    return %arg0, %arg1, %c0_i32 : i32, i32, i32
  }
  func.func @transform_1(%arg0: i32, %arg1: i32) -> (i32, i32) {
    %c0_i32 = arith.constant 0 : i32
    %c0_i32_0 = arith.constant 0 : i32
    %c0_i32_1 = arith.constant 0 : i32
    return %c0_i32, %c0_i32_0 : i32, i32
  }
  func.func @transform_2(%arg0: i32, %arg1: i32) -> (i32, i32) {
    %c0_i32 = arith.constant 0 : i32
    %c0_i32_0 = arith.constant 0 : i32
    %c0_i32_1 = arith.constant 0 : i32
    return %c0_i32, %c0_i32_0 : i32, i32
  }
  func.func @transform_3(%arg0: i32, %arg1: i32) -> (i32, i32) {
    %c0_i32 = arith.constant 0 : i32
    %c0_i32_0 = arith.constant 0 : i32
    %c0_i32_1 = arith.constant 0 : i32
    return %c0_i32, %c0_i32_0 : i32, i32
  }
  func.func @transform_4(%arg0: i32, %arg1: i32) -> (i32, i32) {
    %c0_i32 = arith.constant 0 : i32
    %c0_i32_0 = arith.constant 0 : i32
    %c0_i32_1 = arith.constant 0 : i32
    return %c0_i32, %c0_i32_0 : i32, i32
  }
  func.func @transform_5(%arg0: i32, %arg1: i32) -> (i32, i32) {
    %c0_i32 = arith.constant 0 : i32
    %c0_i32_0 = arith.constant 0 : i32
    %c0_i32_1 = arith.constant 0 : i32
    return %c0_i32, %c0_i32_0 : i32, i32
  }
  func.func @transform_6(%arg0: i32, %arg1: i32) -> (i32, i32) {
    %c0_i32 = arith.constant 0 : i32
    %c0_i32_0 = arith.constant 0 : i32
    %c0_i32_1 = arith.constant 0 : i32
    return %c0_i32, %c0_i32_0 : i32, i32
  }
  func.func @transform_7(%arg0: i32, %arg1: i32) -> (i32, i32) {
    %c0_i32 = arith.constant 0 : i32
    %c0_i32_0 = arith.constant 0 : i32
    %c0_i32_1 = arith.constant 0 : i32
    return %c0_i32, %c0_i32_0 : i32, i32
  }
  func.func @transform_8(%arg0: i32, %arg1: i32) -> (i32, i32) {
    %c0_i32 = arith.constant 0 : i32
    %c0_i32_0 = arith.constant 0 : i32
    %c0_i32_1 = arith.constant 0 : i32
    return %c0_i32, %c0_i32_0 : i32, i32
  }
  func.func @transform_9(%arg0: i32, %arg1: i32) -> (i32, i32, i32) {
    %c0_i32 = arith.constant 0 : i32
    %c0_i32_0 = arith.constant 0 : i32
    return %arg0, %arg1, %c0_i32 : i32, i32, i32
  }
  func.func @transform_10(%arg0: i32, %arg1: i32) -> (i32, i32, i32) {
    %c0_i32 = arith.constant 0 : i32
    %c0_i32_0 = arith.constant 0 : i32
    return %arg0, %arg1, %c0_i32 : i32, i32, i32
  }
  func.func @transform_11(%arg0: i32, %arg1: i32) -> (i32, i32, i32) {
    %c0_i32 = arith.constant 0 : i32
    %c0_i32_0 = arith.constant 0 : i32
    return %arg0, %arg1, %c0_i32 : i32, i32, i32
  }
}

</mosaic_0001>

<llo_original>
// kernel: tpu_custom_call.1
$region0: #{tpu_custom_call.1}
  #allocation0 [shape = 'u32[]', space=smem, size = 0x4, offset = 0x4, fixed_abs, tag = 'smem constant byte address 0x4 - core index']
  #allocation1 [shape = 'u32[144,128]{1,0:T(1,128)}', space=vmem, size = 0x12000, scoped, tag = 'internal scratch']
  %s0 = inlined_call_operand.hbm [shape: f32[2,8,32], index: 0, kind: input, shape index: {}]
  %s1 = inlined_call_operand.vmem [shape: f32[1,32], index: 1, kind: input, shape index: {}]
  %s2 = inlined_call_operand.vmem [shape: f32[1,32], index: 2, kind: input, shape index: {}]
  %s3 = inlined_call_operand.hbm [shape: f32[32,32], index: 3, kind: input, shape index: {}]
  %s4 = inlined_call_operand.hbm [shape: f32[32,32], index: 4, kind: input, shape index: {}]
  %s5 = inlined_call_operand.hbm [shape: f32[32,32], index: 5, kind: input, shape index: {}]
  %s6 = inlined_call_operand.vmem [shape: f32[1,32], index: 6, kind: input, shape index: {}]
  %s7 = inlined_call_operand.vmem [shape: f32[1,32], index: 7, kind: input, shape index: {}]
  %s8 = inlined_call_operand.vmem [shape: f32[1,32], index: 8, kind: input, shape index: {}]
  %s9 = inlined_call_operand.hbm [shape: f32[2,8,32], index: 9, kind: output, shape index: {0}]
  %s10 = inlined_call_operand.hbm [shape: f32[2,8,32], index: 10, kind: output, shape index: {1}]
  %s11 = inlined_call_operand.hbm [shape: f32[2,8,32], index: 11, kind: output, shape index: {2}]
  %12 = xla_tuple %s9, %s10, %s11
  %s13 = sld [smem:[#allocation0]]
  $region101: #{tpu_custom_call.1} parent=0
    _
  %s15 = ssub.s32 1, %s13
  %s16 = scalar_select 0, %s15, %s13
  $region1: #{tpu_custom_call.1} parent=0
    #allocation2 [shape = 'u8[8192]{0}', space=vmem, size = 0x2000, scoped, tag = 'input window, operand 0']
    #allocation3 [shape = 's32[2]{0}', space=sflag, size = 0x8, scoped, tag = 'scoped memory for tpu_custom_call.1']
    #allocation4 [shape = 's32[2]{0}', space=sflag, size = 0x8, scoped, tag = 'scoped memory for tpu_custom_call.1']
    #allocation5 [shape = 'u8[16384]{0}', space=vmem, size = 0x4000, scoped, tag = 'input window, operand 3, single buffered']
    #allocation6 [shape = 's32[1]{0}', space=sflag, size = 0x4, scoped, tag = 'scoped memory for tpu_custom_call.1']
    #allocation7 [shape = 'u8[16384]{0}', space=vmem, size = 0x4000, scoped, tag = 'input window, operand 4, single buffered']
    #allocation8 [shape = 'u8[16384]{0}', space=vmem, size = 0x4000, scoped, tag = 'input window, operand 5, single buffered']
    #allocation9 [shape = 's32[1]{0}', space=sflag, size = 0x4, scoped, tag = 'scoped memory for tpu_custom_call.1']
    #allocation10 [shape = 'u8[8192]{0}', space=vmem, size = 0x2000, scoped, tag = 'output window, operand 0']
    #allocation11 [shape = 'u8[8192]{0}', space=vmem, size = 0x2000, scoped, tag = 'output window, operand 1']
    #allocation12 [shape = 's32[2]{0}', space=sflag, size = 0x8, scoped, tag = 'scoped memory for tpu_custom_call.1']
    #allocation13 [shape = 'u8[8192]{0}', space=vmem, size = 0x2000, scoped, tag = 'output window, operand 2']
    %17 = vsyncpa [#allocation3], 0
    %s18 = scalar_lea.sflag [#allocation3], 1
    %19 = vsyncpa %s18, 0
    %20 = vsyncpa [#allocation6], 0
    %21 = vsyncpa [#allocation9], 0
    %22 = vsyncpa [#allocation4], 0
    %s23 = scalar_lea.sflag [#allocation4], 1
    %24 = vsyncpa %s23, 0
    %25 = vsyncpa [#allocation12], 0
    %s26 = scalar_lea.sflag [#allocation12], 1
    %27 = vsyncpa %s26, 0
    loop: start=0, step=1, limit=4
    $region2: #{tpu_custom_call.1} parent=1 // loop_pre_header
      _
    $region3: #{tpu_custom_call.1} parent=1 // loop_header
      %s29 = sphi 0, %s33
      %p30 = scmp.ge.s32.totalorder %s29, 4
      %s36 = sphi 0, %s48
      %s37 = sphi 0, %s44
      %s38 = sphi 0, %s36
      %s39 = sphi 0, %s37
      %s40 = sphi 0, %s38
      %s41 = sphi 0, %s39
      %s53 = sphi 0, %s55
      %s56 = sphi 0, %s53
      %s57 = sphi 0, %s56
      %s73 = sphi 0, %s57
      %s77 = sphi 0, %s77
      %s79 = sphi 0, %s77
      %s80 = sphi 0, %s79
      %s94 = sphi 0, %s80
      %s98 = sphi 0, %s98
      %s100 = sphi 0, %s98
      %s101 = sphi 0, %s100
      %s115 = sphi 0, %s101
      %s119 = sphi 0, %s119
      %s121 = sphi 0, %s119
      %s122 = sphi 0, %s121
      %s136 = sphi 0, %s122
      %s140 = sphi 0, %s140
      %s142 = sphi 0, %s140
      %s143 = sphi 0, %s142
      %s157 = sphi 0, %s143
      %s161 = sphi 0, %s161
      %s163 = sphi 0, %s161
      %s164 = sphi 0, %s163
      %s178 = sphi 0, %s164
      %s182 = sphi 0, %s182
      %s184 = sphi 0, %s182
      %s185 = sphi 0, %s184
      %s199 = sphi 0, %s185
      %s203 = sphi 0, %s203
      %s205 = sphi 0, %s203
      %s206 = sphi 0, %s205
      %s220 = sphi 0, %s206
      %s224 = sphi 0, %s224
      %s226 = sphi 0, %s224
      %s227 = sphi 0, %s226
      %s241 = sphi 0, %s227
      %s249 = sphi 0, %s251
      %s252 = sphi 0, %s249
      %s253 = sphi 0, %s252
      %s269 = sphi 0, %s253
      %s277 = sphi 0, %s279
      %s280 = sphi 0, %s277
      %s281 = sphi 0, %s280
      %s297 = sphi 0, %s281
      %s305 = sphi 0, %s307
      %s308 = sphi 0, %s305
      %s309 = sphi 0, %s308
      %s325 = sphi 0, %s309
    $region4: #{tpu_custom_call.1} parent=1 // loop_header_branch
      %32 = sbr.rel (%p30) target = $region8
    $region5: #{tpu_custom_call.1} parent=1 // loop_body
      %s34 = ssub.s32 %s29, 1
      %s35 = ssub.s32 %s29, 2
      %s42 = sadd.s32 1, %s37
      %p43 = scmp.ge.s32.totalorder %s42, 1
      %s44 = scalar_select %p43, 0, %s42
      %s45 = sadd.s32 1, %s36
      %s46 = scalar_select %p43, %s45, %s36
      %p47 = scmp.ge.s32.totalorder %s46, 2
      %s48 = scalar_select %p47, 0, %s46
      %s49 = ssub.s32 %s36, %s48
      %s50 = ssub.s32 %s37, %s44
      %s51 = sor.u32 %s49, %s50
      %p52 = scmp.eq.s32.totalorder %s51, 0
      %s54 = sadd.s32 %s53, 1
      %s55 = scalar_select %p52, %s53, %s54
      %p58 = pneg %p52
      %p59 = scmp.eq.s32.totalorder %s29, 1
      %p60 = por %p58, %p59
      %p61 = scmp.ne.s32.totalorder %s53, %s56
      %p62 = scmp.eq.s32.totalorder %s29, 0
      %p63 = por %p61, %p62
      %p64 = scmp.ne.s32.totalorder %s53, %s56
      %p65 = scmp.eq.s32.totalorder %s34, 1
      %p66 = por %p64, %p65
      %p67 = scmp.ne.s32.totalorder %s56, %s57
      %p68 = scmp.eq.s32.totalorder %s34, 0
      %p69 = por %p67, %p68
      %p70 = scmp.ne.s32.totalorder %s56, %s57
      %p71 = scmp.eq.s32.totalorder %s35, 1
      %p72 = por %p70, %p71
      %p74 = scmp.ne.s32.totalorder %s57, %s73
      %p75 = scmp.eq.s32.totalorder %s35, 0
      %p76 = por %p74, %p75
      %s78 = sadd.s32 %s77, 1
      %p81 = scmp.eq.s32.totalorder %s29, 1
      %p82 = scmp.ne.s32.totalorder %s77, %s79
      %p83 = scmp.eq.s32.totalorder %s29, 0
      %p84 = por %p82, %p83
      %p85 = scmp.ne.s32.totalorder %s77, %s79
      %p86 = scmp.eq.s32.totalorder %s34, 1
      %p87 = por %p85, %p86
      %p88 = scmp.ne.s32.totalorder %s79, %s80
      %p89 = scmp.eq.s32.totalorder %s34, 0
      %p90 = por %p88, %p89
      %p91 = scmp.ne.s32.totalorder %s79, %s80
      %p92 = scmp.eq.s32.totalorder %s35, 1
      %p93 = por %p91, %p92
      %p95 = scmp.ne.s32.totalorder %s80, %s94
      %p96 = scmp.eq.s32.totalorder %s35, 0
      %p97 = por %p95, %p96
      %s99 = sadd.s32 %s98, 1
      %p102 = scmp.eq.s32.totalorder %s29, 1
      %p103 = scmp.ne.s32.totalorder %s98, %s100
      %p104 = scmp.eq.s32.totalorder %s29, 0
      %p105 = por %p103, %p104
      %p106 = scmp.ne.s32.totalorder %s98, %s100
      %p107 = scmp.eq.s32.totalorder %s34, 1
      %p108 = por %p106, %p107
      %p109 = scmp.ne.s32.totalorder %s100, %s101
      %p110 = scmp.eq.s32.totalorder %s34, 0
      %p111 = por %p109, %p110
      %p112 = scmp.ne.s32.totalorder %s100, %s101
      %p113 = scmp.eq.s32.totalorder %s35, 1
      %p114 = por %p112, %p113
      %p116 = scmp.ne.s32.totalorder %s101, %s115
      %p117 = scmp.eq.s32.totalorder %s35, 0
      %p118 = por %p116, %p117
      %s120 = sadd.s32 %s119, 1
      %p123 = scmp.eq.s32.totalorder %s29, 1
      %p124 = scmp.ne.s32.totalorder %s119, %s121
      %p125 = scmp.eq.s32.totalorder %s29, 0
      %p126 = por %p124, %p125
      %p127 = scmp.ne.s32.totalorder %s119, %s121
      %p128 = scmp.eq.s32.totalorder %s34, 1
      %p129 = por %p127, %p128
      %p130 = scmp.ne.s32.totalorder %s121, %s122
      %p131 = scmp.eq.s32.totalorder %s34, 0
      %p132 = por %p130, %p131
      %p133 = scmp.ne.s32.totalorder %s121, %s122
      %p134 = scmp.eq.s32.totalorder %s35, 1
      %p135 = por %p133, %p134
      %p137 = scmp.ne.s32.totalorder %s122, %s136
      %p138 = scmp.eq.s32.totalorder %s35, 0
      %p139 = por %p137, %p138
      %s141 = sadd.s32 %s140, 1
      %p144 = scmp.eq.s32.totalorder %s29, 1
      %p145 = scmp.ne.s32.totalorder %s140, %s142
      %p146 = scmp.eq.s32.totalorder %s29, 0
      %p147 = por %p145, %p146
      %p148 = scmp.ne.s32.totalorder %s140, %s142
      %p149 = scmp.eq.s32.totalorder %s34, 1
      %p150 = por %p148, %p149
      %p151 = scmp.ne.s32.totalorder %s142, %s143
      %p152 = scmp.eq.s32.totalorder %s34, 0
      %p153 = por %p151, %p152
      %p154 = scmp.ne.s32.totalorder %s142, %s143
      %p155 = scmp.eq.s32.totalorder %s35, 1
      %p156 = por %p154, %p155
      %p158 = scmp.ne.s32.totalorder %s143, %s157
      %p159 = scmp.eq.s32.totalorder %s35, 0
      %p160 = por %p158, %p159
      %s162 = sadd.s32 %s161, 1
      %p165 = scmp.eq.s32.totalorder %s29, 1
      %p166 = scmp.ne.s32.totalorder %s161, %s163
      %p167 = scmp.eq.s32.totalorder %s29, 0
      %p168 = por %p166, %p167
      %p169 = scmp.ne.s32.totalorder %s161, %s163
      %p170 = scmp.eq.s32.totalorder %s34, 1
      %p171 = por %p169, %p170
      %p172 = scmp.ne.s32.totalorder %s163, %s164
      %p173 = scmp.eq.s32.totalorder %s34, 0
      %p174 = por %p172, %p173
      %p175 = scmp.ne.s32.totalorder %s163, %s164
      %p176 = scmp.eq.s32.totalorder %s35, 1
      %p177 = por %p175, %p176
      %p179 = scmp.ne.s32.totalorder %s164, %s178
      %p180 = scmp.eq.s32.totalorder %s35, 0
      %p181 = por %p179, %p180
      %s183 = sadd.s32 %s182, 1
      %p186 = scmp.eq.s32.totalorder %s29, 1
      %p187 = scmp.ne.s32.totalorder %s182, %s184
      %p188 = scmp.eq.s32.totalorder %s29, 0
      %p189 = por %p187, %p188
      %p190 = scmp.ne.s32.totalorder %s182, %s184
      %p191 = scmp.eq.s32.totalorder %s34, 1
      %p192 = por %p190, %p191
      %p193 = scmp.ne.s32.totalorder %s184, %s185
      %p194 = scmp.eq.s32.totalorder %s34, 0
      %p195 = por %p193, %p194
      %p196 = scmp.ne.s32.totalorder %s184, %s185
      %p197 = scmp.eq.s32.totalorder %s35, 1
      %p198 = por %p196, %p197
      %p200 = scmp.ne.s32.totalorder %s185, %s199
      %p201 = scmp.eq.s32.totalorder %s35, 0
      %p202 = por %p200, %p201
      %s204 = sadd.s32 %s203, 1
      %p207 = scmp.eq.s32.totalorder %s29, 1
      %p208 = scmp.ne.s32.totalorder %s203, %s205
      %p209 = scmp.eq.s32.totalorder %s29, 0
      %p210 = por %p208, %p209
      %p211 = scmp.ne.s32.totalorder %s203, %s205
      %p212 = scmp.eq.s32.totalorder %s34, 1
      %p213 = por %p211, %p212
      %p214 = scmp.ne.s32.totalorder %s205, %s206
      %p215 = scmp.eq.s32.totalorder %s34, 0
      %p216 = por %p214, %p215
      %p217 = scmp.ne.s32.totalorder %s205, %s206
      %p218 = scmp.eq.s32.totalorder %s35, 1
      %p219 = por %p217, %p218
      %p221 = scmp.ne.s32.totalorder %s206, %s220
      %p222 = scmp.eq.s32.totalorder %s35, 0
      %p223 = por %p221, %p222
      %s225 = sadd.s32 %s224, 1
      %p228 = scmp.eq.s32.totalorder %s29, 1
      %p229 = scmp.ne.s32.totalorder %s224, %s226
      %p230 = scmp.eq.s32.totalorder %s29, 0
      %p231 = por %p229, %p230
      %p232 = scmp.ne.s32.totalorder %s224, %s226
      %p233 = scmp.eq.s32.totalorder %s34, 1
      %p234 = por %p232, %p233
      %p235 = scmp.ne.s32.totalorder %s226, %s227
      %p236 = scmp.eq.s32.totalorder %s34, 0
      %p237 = por %p235, %p236
      %p238 = scmp.ne.s32.totalorder %s226, %s227
      %p239 = scmp.eq.s32.totalorder %s35, 1
      %p240 = por %p238, %p239
      %p242 = scmp.ne.s32.totalorder %s227, %s241
      %p243 = scmp.eq.s32.totalorder %s35, 0
      %p244 = por %p242, %p243
      %s245 = ssub.s32 %s36, %s48
      %s246 = ssub.s32 %s37, %s44
      %s247 = sor.u32 %s245, %s246
      %p248 = scmp.eq.s32.totalorder %s247, 0
      %s250 = sadd.s32 %s249, 1
      %s251 = scalar_select %p248, %s249, %s250
      %p254 = pneg %p248
      %p255 = scmp.eq.s32.totalorder %s29, 1
      %p256 = por %p254, %p255
      %p257 = scmp.ne.s32.totalorder %s249, %s252
      %p258 = scmp.eq.s32.totalorder %s29, 0
      %p259 = por %p257, %p258
      %p260 = scmp.ne.s32.totalorder %s249, %s252
      %p261 = scmp.eq.s32.totalorder %s34, 1
      %p262 = por %p260, %p261
      %p263 = scmp.ne.s32.totalorder %s252, %s253
      %p264 = scmp.eq.s32.totalorder %s34, 0
      %p265 = por %p263, %p264
      %p266 = scmp.ne.s32.totalorder %s252, %s253
      %p267 = scmp.eq.s32.totalorder %s35, 1
      %p268 = por %p266, %p267
      %p270 = scmp.ne.s32.totalorder %s253, %s269
      %p271 = scmp.eq.s32.totalorder %s35, 0
      %p272 = por %p270, %p271
      %s273 = ssub.s32 %s36, %s48
      %s274 = ssub.s32 %s37, %s44
      %s275 = sor.u32 %s273, %s274
      %p276 = scmp.eq.s32.totalorder %s275, 0
      %s278 = sadd.s32 %s277, 1
      %s279 = scalar_select %p276, %s277, %s278
      %p282 = pneg %p276
      %p283 = scmp.eq.s32.totalorder %s29, 1
      %p284 = por %p282, %p283
      %p285 = scmp.ne.s32.totalorder %s277, %s280
      %p286 = scmp.eq.s32.totalorder %s29, 0
      %p287 = por %p285, %p286
      %p288 = scmp.ne.s32.totalorder %s277, %s280
      %p289 = scmp.eq.s32.totalorder %s34, 1
      %p290 = por %p288, %p289
      %p291 = scmp.ne.s32.totalorder %s280, %s281
      %p292 = scmp.eq.s32.totalorder %s34, 0
      %p293 = por %p291, %p292
      %p294 = scmp.ne.s32.totalorder %s280, %s281
      %p295 = scmp.eq.s32.totalorder %s35, 1
      %p296 = por %p294, %p295
      %p298 = scmp.ne.s32.totalorder %s281, %s297
      %p299 = scmp.eq.s32.totalorder %s35, 0
      %p300 = por %p298, %p299
      %s301 = ssub.s32 %s36, %s48
      %s302 = ssub.s32 %s37, %s44
      %s303 = sor.u32 %s301, %s302
      %p304 = scmp.eq.s32.totalorder %s303, 0
      %s306 = sadd.s32 %s305, 1
      %s307 = scalar_select %p304, %s305, %s306
      %p310 = pneg %p304
      %p311 = scmp.eq.s32.totalorder %s29, 1
      %p312 = por %p310, %p311
      %p313 = scmp.ne.s32.totalorder %s305, %s308
      %p314 = scmp.eq.s32.totalorder %s29, 0
      %p315 = por %p313, %p314
      %p316 = scmp.ne.s32.totalorder %s305, %s308
      %p317 = scmp.eq.s32.totalorder %s34, 1
      %p318 = por %p316, %p317
      %p319 = scmp.ne.s32.totalorder %s308, %s309
      %p320 = scmp.eq.s32.totalorder %s34, 0
      %p321 = por %p319, %p320
      %p322 = scmp.ne.s32.totalorder %s308, %s309
      %p323 = scmp.eq.s32.totalorder %s35, 1
      %p324 = por %p322, %p323
      %p326 = scmp.ne.s32.totalorder %s309, %s325
      %p327 = scmp.eq.s32.totalorder %s35, 0
      %p328 = por %p326, %p327
      %p329 = scmp.le.s32.totalorder 1, %s29
      %p330 = scmp.lt.s32.totalorder %s29, 3
      %p331 = pnand %p329, %p330
      %p332 = pneg %p331
      // Predicated region
      $region9: #{tpu_custom_call.1} parent=5 // pred_check
        _
      $region10: #{tpu_custom_call.1} parent=5 // pred_check_branch
        %334 = sbr.rel (%p331) target = $region12
      $region11: #{tpu_custom_call.1} parent=5 // pred_region
        %s335 = ssub.s32 %s29, 1
        // Predicated region
        $region13: #{tpu_custom_call.1} parent=11 // pred_check
          %p336 = pneg %p90
        $region14: #{tpu_custom_call.1} parent=11 // pred_check_branch
          %338 = sbr.rel (%p336) target = $region16
        $region15: #{tpu_custom_call.1} parent=11 // pred_region
          _
        $region16: #{tpu_custom_call.1} parent=11 // pred_fallthru
          _
        // Predicated region
        $region17: #{tpu_custom_call.1} parent=11 // pred_check
          %p339 = pneg %p111
        $region18: #{tpu_custom_call.1} parent=11 // pred_check_branch
          %341 = sbr.rel (%p339) target = $region20
        $region19: #{tpu_custom_call.1} parent=11 // pred_region
          _
        $region20: #{tpu_custom_call.1} parent=11 // pred_fallthru
          _
        // Predicated region
        $region21: #{tpu_custom_call.1} parent=11 // pred_check
          %p342 = pneg %p132
        $region22: #{tpu_custom_call.1} parent=11 // pred_check_branch
          %344 = sbr.rel (%p342) target = $region24
        $region23: #{tpu_custom_call.1} parent=11 // pred_region
          %s346 = ssub.s32 512, 512
          %347 = vsyncadd [#allocation6], %s346
          %s348 = sshll.u32 [#allocation5], 4
          %s349 = int_to_ptr.vmem [resolvable:$true] %s348
          %354 = dma.hbm_to_vmem [thread:$0]  %s3, 512, %s349, [#allocation6], 128, 128, 8
        $region24: #{tpu_custom_call.1} parent=11 // pred_fallthru
          _
        // Predicated region
        $region25: #{tpu_custom_call.1} parent=11 // pred_check
          %p355 = pneg %p153
        $region26: #{tpu_custom_call.1} parent=11 // pred_check_branch
          %357 = sbr.rel (%p355) target = $region28
        $region27: #{tpu_custom_call.1} parent=11 // pred_region
          %s359 = ssub.s32 512, 512
          %360 = vsyncadd [#allocation6], %s359
          %s361 = sshll.u32 [#allocation7], 4
          %s362 = int_to_ptr.vmem [resolvable:$true] %s361
          %367 = dma.hbm_to_vmem [thread:$0]  %s4, 512, %s362, [#allocation6], 128, 128, 8
        $region28: #{tpu_custom_call.1} parent=11 // pred_fallthru
          _
        // Predicated region
        $region29: #{tpu_custom_call.1} parent=11 // pred_check
          %p368 = pneg %p174
        $region30: #{tpu_custom_call.1} parent=11 // pred_check_branch
          %370 = sbr.rel (%p368) target = $region32
        $region31: #{tpu_custom_call.1} parent=11 // pred_region
          %s372 = ssub.s32 512, 512
          %373 = vsyncadd [#allocation9], %s372
          %s374 = sshll.u32 [#allocation8], 4
          %s375 = int_to_ptr.vmem [resolvable:$true] %s374
          %380 = dma.hbm_to_vmem [thread:$0]  %s5, 512, %s375, [#allocation9], 128, 128, 8
        $region32: #{tpu_custom_call.1} parent=11 // pred_fallthru
          _
        // Predicated region
        $region33: #{tpu_custom_call.1} parent=11 // pred_check
          %p381 = pneg %p195
        $region34: #{tpu_custom_call.1} parent=11 // pred_check_branch
          %383 = sbr.rel (%p381) target = $region36
        $region35: #{tpu_custom_call.1} parent=11 // pred_region
          _
        $region36: #{tpu_custom_call.1} parent=11 // pred_fallthru
          _
        // Predicated region
        $region37: #{tpu_custom_call.1} parent=11 // pred_check
          %p384 = pneg %p216
        $region38: #{tpu_custom_call.1} parent=11 // pred_check_branch
          %386 = sbr.rel (%p384) target = $region40
        $region39: #{tpu_custom_call.1} parent=11 // pred_region
          _
        $region40: #{tpu_custom_call.1} parent=11 // pred_fallthru
          _
        // Predicated region
        $region41: #{tpu_custom_call.1} parent=11 // pred_check
          %p387 = pneg %p237
        $region42: #{tpu_custom_call.1} parent=11 // pred_check_branch
          %389 = sbr.rel (%p387) target = $region44
        $region43: #{tpu_custom_call.1} parent=11 // pred_region
          _
        $region44: #{tpu_custom_call.1} parent=11 // pred_fallthru
          _
      $region12: #{tpu_custom_call.1} parent=5 // pred_fallthru
        _
      %p390 = scmp.lt.s32.totalorder %s29, 2
      // Predicated region
      $region45: #{tpu_custom_call.1} parent=5 // pred_check
        %p391 = pneg %p390
      $region46: #{tpu_custom_call.1} parent=5 // pred_check_branch
        %393 = sbr.rel (%p391) target = $region48
      $region47: #{tpu_custom_call.1} parent=5 // pred_region
        // Predicated region
        $region49: #{tpu_custom_call.1} parent=47 // pred_check
          %p394 = pneg %p63
        $region50: #{tpu_custom_call.1} parent=47 // pred_check_branch
          %396 = sbr.rel (%p394) target = $region52
        $region51: #{tpu_custom_call.1} parent=47 // pred_region
          %s397 = sand.u32 %s53, 1
          %s398 = scalar_lea.sflag [#allocation3], %s397
          %s399 = sand.u32 %s53, 1
          %s400 = smul.addr %s399, 8
          %s401 = scalar_lea.vmem [#allocation2], %s400
          %s403 = ssub.s32 128, 128
          %404 = vsyncadd %s398, %s403
          %s405 = sadd.s32 %s37, %s36
          %s406 = smul.addr %s405, 128
          %s407 = scalar_lea.hbm %s0, %s406
          %s409 = sshll.u32 %s401, 4
          %s410 = int_to_ptr.vmem [resolvable:$true] %s409
          %412 = dma.hbm_to_vmem [thread:$0]  %s407, 128, %s410, %s398
        $region52: #{tpu_custom_call.1} parent=47 // pred_fallthru
          _
      $region48: #{tpu_custom_call.1} parent=5 // pred_fallthru
        _
      %p413 = scmp.le.s32.totalorder 1, %s29
      %p414 = scmp.lt.s32.totalorder %s29, 3
      %p415 = pnand %p413, %p414
      %p416 = pneg %p415
      // Predicated region
      $region53: #{tpu_custom_call.1} parent=5 // pred_check
        _
      $region54: #{tpu_custom_call.1} parent=5 // pred_check_branch
        %418 = sbr.rel (%p415) target = $region56
      $region55: #{tpu_custom_call.1} parent=5 // pred_region
        %s419 = ssub.s32 %s29, 1
        %s420 = sand.u32 %s56, 1
        %s421 = scalar_lea.sflag [#allocation3], %s420
        %s422 = sand.u32 %s56, 1
        %s423 = smul.addr %s422, 8
        %s424 = scalar_lea.vmem [#allocation2], %s423
        // Predicated region
        $region57: #{tpu_custom_call.1} parent=55 // pred_check
          %p425 = pneg %p69
        $region58: #{tpu_custom_call.1} parent=55 // pred_check_branch
          %427 = sbr.rel (%p425) target = $region60
        $region59: #{tpu_custom_call.1} parent=55 // pred_region
          %428 = dma.done %s421, 128
        $region60: #{tpu_custom_call.1} parent=55 // pred_fallthru
          _
        // Predicated region
        $region61: #{tpu_custom_call.1} parent=55 // pred_check
          %p429 = pneg %p132
        $region62: #{tpu_custom_call.1} parent=55 // pred_check_branch
          %431 = sbr.rel (%p429) target = $region64
        $region63: #{tpu_custom_call.1} parent=55 // pred_region
          %432 = dma.done [#allocation6], 512
        $region64: #{tpu_custom_call.1} parent=55 // pred_fallthru
          _
        // Predicated region
        $region65: #{tpu_custom_call.1} parent=55 // pred_check
          %p433 = pneg %p153
        $region66: #{tpu_custom_call.1} parent=55 // pred_check_branch
          %435 = sbr.rel (%p433) target = $region68
        $region67: #{tpu_custom_call.1} parent=55 // pred_region
          %436 = dma.done [#allocation6], 512
        $region68: #{tpu_custom_call.1} parent=55 // pred_fallthru
          _
        // Predicated region
        $region69: #{tpu_custom_call.1} parent=55 // pred_check
          %p437 = pneg %p174
        $region70: #{tpu_custom_call.1} parent=55 // pred_check_branch
          %439 = sbr.rel (%p437) target = $region72
        $region71: #{tpu_custom_call.1} parent=55 // pred_region
          %440 = dma.done [#allocation9], 512
        $region72: #{tpu_custom_call.1} parent=55 // pred_fallthru
          _
        %s441 = sand.u32 %s56, 1
        %s442 = scalar_lea.sflag [#allocation3], %s441
        %s443 = sand.u32 %s56, 1
        %s444 = smul.addr %s443, 8
        %s445 = scalar_lea.vmem [#allocation2], %s444
        %p446 = pneg %p69
        %p447 = pneg %p66
        %p448 = pneg %p90
        %p449 = pneg %p87
        %p450 = pneg %p111
        %p451 = pneg %p108
        %p452 = pneg %p132
        %p453 = pneg %p129
        %p454 = pneg %p153
        %p455 = pneg %p150
        %p456 = pneg %p174
        %p457 = pneg %p171
        %p458 = pneg %p195
        %p459 = pneg %p192
        %p460 = pneg %p216
        %p461 = pneg %p213
        %p462 = pneg %p237
        %p463 = pneg %p234
        %p464 = pneg %p265
        %p465 = pneg %p262
        %s466 = sand.u32 %s252, 1
        %s467 = scalar_lea.sflag [#allocation4], %s466
        %s468 = sand.u32 %s252, 1
        %s469 = smul.addr %s468, 8
        %s470 = scalar_lea.vmem [#allocation10], %s469
        %p471 = pneg %p293
        %p472 = pneg %p290
        %s473 = sand.u32 %s34, 1
        %s474 = scalar_lea.sflag [#allocation12], %s473
        %s475 = sand.u32 %s280, 1
        %s476 = smul.addr %s475, 8
        %s477 = scalar_lea.vmem [#allocation11], %s476
        %p478 = pneg %p321
        %p479 = pneg %p318
        %s480 = sand.u32 %s34, 1
        %s481 = scalar_lea.sflag [#allocation12], %s480
        %s482 = sand.u32 %s308, 1
        %s483 = smul.addr %s482, 8
        %s484 = scalar_lea.vmem [#allocation13], %s483
        %v485 = vld [vmem:[%s424] sm:$0xff]
        %v486 = vld [vmem:[%s1] sm:$0x1]
        %v487 = vld [vmem:[%s2] sm:$0x1]
        %vm488 = vcmask 261120
        %v489 = vsel %vm488, %v485, 0.0
        %490 = vadd.xlane.f32.xlu0 %v489
        %v491 = vpop.xlane.xlu0 %490
        %v492 = vrcp.pop 32.0
        %v493 = vmul.f32 %v491, %v492
        %v494 = vsub.f32 %v485, %v493
        %v495 = vmul.f32 %v494, %v494
        %v496 = vsel %vm488, %v495, 0.0
        %497 = vadd.xlane.f32.xlu0 %v496
        %v498 = vpop.xlane.xlu0 %497
        %v499 = vmul.f32 %v498, %v492
        %v500 = vadd.f32 %v499, 1e-05
        %v501 = vrsqrt.pop %v500
        %v502 = vmul.f32 %v494, %v501
        %v504 = vlaneseq
        %v505 = vshrl.u32 %v504, 7
        %v506 = vsub.s32 0, %v505
        %v507 = vrot.slane %v486, %v506
        %v509 = vmul.f32 %v502, %v507
        %v511 = vlaneseq
        %v512 = vshrl.u32 %v511, 7
        %v513 = vsub.s32 0, %v512
        %v514 = vrot.slane %v487, %v513
        %v516 = vadd.f32 %v509, %v514
        %v517 = vld [vmem:[#allocation5] sm:$0xff]
        %v518 = vld [vmem:[#allocation5 + $0x8] sm:$0xff]
        %v519 = vld [vmem:[#allocation5 + $0x10] sm:$0xff]
        %v520 = vld [vmem:[#allocation5 + $0x18] sm:$0xff]
        %v521 = vld [vmem:[%s6] sm:$0x1]
        %v523 = vlaneseq
        %v524 = vshrl.u32 %v523, 7
        %v525 = vsub.s32 0, %v524
        %v526 = vrot.slane %v521, %v525
        %v529 = vsel %vm488, %v516, 0
        %531 = vmatprep.subr.mxu0 0.0
        %532 = vmatpush1.msra.mxu0 %v517
        %533 = vmatprep.subr.mxu0 0.0
        %534 = vmatpush1.msra.mxu0 %v518
        %535 = vmatprep.subr.mxu0 0.0
        %536 = vmatpush1.msra.mxu0 %v519
        %537 = vmatprep.subr.mxu0 0.0
        %538 = vmatpush1.msra.mxu0 %v520
        %539 = vmatprep.subr.mxu0 0.0
        %540 = vmatpush1.msra.mxu0 0.0
        %541 = vmatprep.subr.mxu0 0.0
        %542 = vmatpush1.msra.mxu0 0.0
        %543 = vmatprep.subr.mxu0 0.0
        %544 = vmatpush1.msra.mxu0 0.0
        %545 = vmatprep.subr.mxu0 0.0
        %546 = vmatpush1.msra.mxu0 0.0
        %547 = vmatprep.subr.mxu0 0.0
        %548 = vmatpush1.msra.mxu0 0.0
        %549 = vmatprep.subr.mxu0 0.0
        %550 = vmatpush1.msra.mxu0 0.0
        %551 = vmatprep.subr.mxu0 0.0
        %552 = vmatpush1.msra.mxu0 0.0
        %553 = vmatprep.subr.mxu0 0.0
        %554 = vmatpush1.msra.mxu0 0.0
        %555 = vmatprep.subr.mxu0 0.0
        %556 = vmatpush1.msra.mxu0 0.0
        %557 = vmatprep.subr.mxu0 0.0
        %558 = vmatpush1.msra.mxu0 0.0
        %559 = vmatprep.subr.mxu0 0.0
        %560 = vmatpush1.msra.mxu0 0.0
        %561 = vmatprep.subr.mxu0 0.0
        %562 = vmatpush1.msra.mxu0 0.0
        %563 = vmatprep.subr.mxu0 0.0
        %564 = vmatpush1.msra.mxu0 0.0
        %565 = vmatprep.subr.mxu0 0.0
        %566 = vmatpush1.msra.mxu0 0.0
        %567 = vmatprep.subr.mxu0 0.0
        %568 = vmatpush1.msra.mxu0 0.0
        %569 = vmatprep.subr.mxu0 0.0
        %570 = vmatpush1.msra.mxu0 0.0
        %571 = vmatprep.subr.mxu0 0.0
        %572 = vmatpush1.msra.mxu0 0.0
        %573 = vmatprep.subr.mxu0 0.0
        %574 = vmatpush1.msra.mxu0 0.0
        %575 = vmatprep.subr.mxu0 0.0
        %576 = vmatpush1.msra.mxu0 0.0
        %577 = vmatprep.subr.mxu0 0.0
        %578 = vmatpush1.msra.mxu0 0.0
        %579 = vmatprep.subr.mxu0 0.0
        %580 = vmatpush1.msra.mxu0 0.0
        %581 = vmatprep.subr.mxu0 0.0
        %582 = vmatpush1.msra.mxu0 0.0
        %583 = vmatprep.subr.mxu0 0.0
        %584 = vmatpush1.msra.mxu0 0.0
        %585 = vmatprep.subr.mxu0 0.0
        %586 = vmatpush1.msra.mxu0 0.0
        %587 = vmatprep.subr.mxu0 0.0
        %588 = vmatpush1.msra.mxu0 0.0
        %589 = vmatprep.subr.mxu0 0.0
        %590 = vmatpush1.msra.mxu0 0.0
        %591 = vmatprep.subr.mxu0 0.0
        %592 = vmatpush1.msra.mxu0 0.0
        %593 = vmatprep.subr.mxu0 0.0
        %594 = vmatpush1.msra.mxu0 0.0
        %595 = vmatprep.mubr.f32.mxu0 0.0
        %596 = vmatmul.mubr.f32.gmra.mrb[0].mxu0 %v529
        %v597 = vpop.f32.mrb[0].mxu0
        %v598 = vadd.f32 %v526, %v597
        %v599 = vpop.f32.mrb[0].mxu0
        %600 = vdwg.mxu0
        %v601 = vld [vmem:[#allocation7] sm:$0xff]
        %v602 = vld [vmem:[#allocation7 + $0x8] sm:$0xff]
        %v603 = vld [vmem:[#allocation7 + $0x10] sm:$0xff]
        %v604 = vld [vmem:[#allocation7 + $0x18] sm:$0xff]
        %v605 = vld [vmem:[%s7] sm:$0x1]
        %v607 = vlaneseq
        %v608 = vshrl.u32 %v607, 7
        %v609 = vsub.s32 0, %v608
        %v610 = vrot.slane %v605, %v609
        %612 = vmatprep.subr.mxu0 0.0
        %613 = vmatpush1.msra.mxu0 %v601
        %614 = vmatprep.subr.mxu0 0.0
        %615 = vmatpush1.msra.mxu0 %v602
        %616 = vmatprep.subr.mxu0 0.0
        %617 = vmatpush1.msra.mxu0 %v603
        %618 = vmatprep.subr.mxu0 0.0
        %619 = vmatpush1.msra.mxu0 %v604
        %620 = vmatprep.subr.mxu0 0.0
        %621 = vmatpush1.msra.mxu0 0.0
        %622 = vmatprep.subr.mxu0 0.0
        %623 = vmatpush1.msra.mxu0 0.0
        %624 = vmatprep.subr.mxu0 0.0
        %625 = vmatpush1.msra.mxu0 0.0
        %626 = vmatprep.subr.mxu0 0.0
        %627 = vmatpush1.msra.mxu0 0.0
        %628 = vmatprep.subr.mxu0 0.0
        %629 = vmatpush1.msra.mxu0 0.0
        %630 = vmatprep.subr.mxu0 0.0
        %631 = vmatpush1.msra.mxu0 0.0
        %632 = vmatprep.subr.mxu0 0.0
        %633 = vmatpush1.msra.mxu0 0.0
        %634 = vmatprep.subr.mxu0 0.0
        %635 = vmatpush1.msra.mxu0 0.0
        %636 = vmatprep.subr.mxu0 0.0
        %637 = vmatpush1.msra.mxu0 0.0
        %638 = vmatprep.subr.mxu0 0.0
        %639 = vmatpush1.msra.mxu0 0.0
        %640 = vmatprep.subr.mxu0 0.0
        %641 = vmatpush1.msra.mxu0 0.0
        %642 = vmatprep.subr.mxu0 0.0
        %643 = vmatpush1.msra.mxu0 0.0
        %644 = vmatprep.subr.mxu0 0.0
        %645 = vmatpush1.msra.mxu0 0.0
        %646 = vmatprep.subr.mxu0 0.0
        %647 = vmatpush1.msra.mxu0 0.0
        %648 = vmatprep.subr.mxu0 0.0
        %649 = vmatpush1.msra.mxu0 0.0
        %650 = vmatprep.subr.mxu0 0.0
        %651 = vmatpush1.msra.mxu0 0.0
        %652 = vmatprep.subr.mxu0 0.0
        %653 = vmatpush1.msra.mxu0 0.0
        %654 = vmatprep.subr.mxu0 0.0
        %655 = vmatpush1.msra.mxu0 0.0
        %656 = vmatprep.subr.mxu0 0.0
        %657 = vmatpush1.msra.mxu0 0.0
        %658 = vmatprep.subr.mxu0 0.0
        %659 = vmatpush1.msra.mxu0 0.0
        %660 = vmatprep.subr.mxu0 0.0
        %661 = vmatpush1.msra.mxu0 0.0
        %662 = vmatprep.subr.mxu0 0.0
        %663 = vmatpush1.msra.mxu0 0.0
        %664 = vmatprep.subr.mxu0 0.0
        %665 = vmatpush1.msra.mxu0 0.0
        %666 = vmatprep.subr.mxu0 0.0
        %667 = vmatpush1.msra.mxu0 0.0
        %668 = vmatprep.subr.mxu0 0.0
        %669 = vmatpush1.msra.mxu0 0.0
        %670 = vmatprep.subr.mxu0 0.0
        %671 = vmatpush1.msra.mxu0 0.0
        %672 = vmatprep.subr.mxu0 0.0
        %673 = vmatpush1.msra.mxu0 0.0
        %674 = vmatprep.subr.mxu0 0.0
        %675 = vmatpush1.msra.mxu0 0.0
        %676 = vmatprep.mubr.f32.mxu0 0.0
        %677 = vmatmul.mubr.f32.gmra.mrb[0].mxu0 %v529
        %v678 = vpop.f32.mrb[0].mxu0
        %v679 = vadd.f32 %v610, %v678
        %v680 = vpop.f32.mrb[0].mxu0
        %681 = vdwg.mxu0
        %v682 = vld [vmem:[#allocation8] sm:$0xff]
        %v683 = vld [vmem:[#allocation8 + $0x8] sm:$0xff]
        %v684 = vld [vmem:[#allocation8 + $0x10] sm:$0xff]
        %v685 = vld [vmem:[#allocation8 + $0x18] sm:$0xff]
        %v686 = vld [vmem:[%s8] sm:$0x1]
        %v688 = vlaneseq
        %v689 = vshrl.u32 %v688, 7
        %v690 = vsub.s32 0, %v689
        %v691 = vrot.slane %v686, %v690
        %693 = vmatprep.subr.mxu0 0.0
        %694 = vmatpush1.msra.mxu0 %v682
        %695 = vmatprep.subr.mxu0 0.0
        %696 = vmatpush1.msra.mxu0 %v683
        %697 = vmatprep.subr.mxu0 0.0
        %698 = vmatpush1.msra.mxu0 %v684
        %699 = vmatprep.subr.mxu0 0.0
        %700 = vmatpush1.msra.mxu0 %v685
        %701 = vmatprep.subr.mxu0 0.0
        %702 = vmatpush1.msra.mxu0 0.0
        %703 = vmatprep.subr.mxu0 0.0
        %704 = vmatpush1.msra.mxu0 0.0
        %705 = vmatprep.subr.mxu0 0.0
        %706 = vmatpush1.msra.mxu0 0.0
        %707 = vmatprep.subr.mxu0 0.0
        %708 = vmatpush1.msra.mxu0 0.0
        %709 = vmatprep.subr.mxu0 0.0
        %710 = vmatpush1.msra.mxu0 0.0
        %711 = vmatprep.subr.mxu0 0.0
        %712 = vmatpush1.msra.mxu0 0.0
        %713 = vmatprep.subr.mxu0 0.0
        %714 = vmatpush1.msra.mxu0 0.0
        %715 = vmatprep.subr.mxu0 0.0
        %716 = vmatpush1.msra.mxu0 0.0
        %717 = vmatprep.subr.mxu0 0.0
        %718 = vmatpush1.msra.mxu0 0.0
        %719 = vmatprep.subr.mxu0 0.0
        %720 = vmatpush1.msra.mxu0 0.0
        %721 = vmatprep.subr.mxu0 0.0
        %722 = vmatpush1.msra.mxu0 0.0
        %723 = vmatprep.subr.mxu0 0.0
        %724 = vmatpush1.msra.mxu0 0.0
        %725 = vmatprep.subr.mxu0 0.0
        %726 = vmatpush1.msra.mxu0 0.0
        %727 = vmatprep.subr.mxu0 0.0
        %728 = vmatpush1.msra.mxu0 0.0
        %729 = vmatprep.subr.mxu0 0.0
        %730 = vmatpush1.msra.mxu0 0.0
        %731 = vmatprep.subr.mxu0 0.0
        %732 = vmatpush1.msra.mxu0 0.0
        %733 = vmatprep.subr.mxu0 0.0
        %734 = vmatpush1.msra.mxu0 0.0
        %735 = vmatprep.subr.mxu0 0.0
        %736 = vmatpush1.msra.mxu0 0.0
        %737 = vmatprep.subr.mxu0 0.0
        %738 = vmatpush1.msra.mxu0 0.0
        %739 = vmatprep.subr.mxu0 0.0
        %740 = vmatpush1.msra.mxu0 0.0
        %741 = vmatprep.subr.mxu0 0.0
        %742 = vmatpush1.msra.mxu0 0.0
        %743 = vmatprep.subr.mxu0 0.0
        %744 = vmatpush1.msra.mxu0 0.0
        %745 = vmatprep.subr.mxu0 0.0
        %746 = vmatpush1.msra.mxu0 0.0
        %747 = vmatprep.subr.mxu0 0.0
        %748 = vmatpush1.msra.mxu0 0.0
        %749 = vmatprep.subr.mxu0 0.0
        %750 = vmatpush1.msra.mxu0 0.0
        %751 = vmatprep.subr.mxu0 0.0
        %752 = vmatpush1.msra.mxu0 0.0
        %753 = vmatprep.subr.mxu0 0.0
        %754 = vmatpush1.msra.mxu0 0.0
        %755 = vmatprep.subr.mxu0 0.0
        %756 = vmatpush1.msra.mxu0 0.0
        %757 = vmatprep.mubr.f32.mxu0 0.0
        %758 = vmatmul.mubr.f32.gmra.mrb[0].mxu0 %v529
        %v759 = vpop.f32.mrb[0].mxu0
        %v760 = vadd.f32 %v691, %v759
        %v761 = vpop.f32.mrb[0].mxu0
        %762 = vdwg.mxu0
        %763 = vst.msk [vmem:[%s470] sm:$0xff] %vm488, %v598
        %764 = vst.msk [vmem:[%s477] sm:$0xff] %vm488, %v679
        %765 = vst.msk [vmem:[%s484] sm:$0xff] %vm488, %v760
        %s766 = sand.u32 %s252, 1
        %s767 = scalar_lea.sflag [#allocation4], %s766
        %s768 = sand.u32 %s252, 1
        %s769 = smul.addr %s768, 8
        %s770 = scalar_lea.vmem [#allocation10], %s769
        %s771 = sand.u32 %s34, 1
        %s772 = scalar_lea.sflag [#allocation12], %s771
        %s773 = sand.u32 %s280, 1
        %s774 = smul.addr %s773, 8
        %s775 = scalar_lea.vmem [#allocation11], %s774
        %s776 = sand.u32 %s34, 1
        %s777 = scalar_lea.sflag [#allocation12], %s776
        %s778 = sand.u32 %s308, 1
        %s779 = smul.addr %s778, 8
        %s780 = scalar_lea.vmem [#allocation13], %s779
        // Predicated region
        $region73: #{tpu_custom_call.1} parent=55 // pred_check
          %p781 = pneg %p262
        $region74: #{tpu_custom_call.1} parent=55 // pred_check_branch
          %783 = sbr.rel (%p781) target = $region76
        $region75: #{tpu_custom_call.1} parent=55 // pred_region
          %s785 = ssub.s32 128, 128
          %786 = vsyncadd %s767, %s785
          %s787 = sadd.s32 %s39, %s38
          %s788 = smul.addr %s787, 128
          %s789 = scalar_lea.hbm %s9, %s788
          %s791 = sshll.u32 %s770, 4
          %s792 = int_to_ptr.vmem [resolvable:$true] %s791
          %794 = dma.vmem_to_hbm [thread:$0]  %s792, 128, %s789, %s767
        $region76: #{tpu_custom_call.1} parent=55 // pred_fallthru
          _
        // Predicated region
        $region77: #{tpu_custom_call.1} parent=55 // pred_check
          %p795 = pneg %p290
        $region78: #{tpu_custom_call.1} parent=55 // pred_check_branch
          %797 = sbr.rel (%p795) target = $region80
        $region79: #{tpu_custom_call.1} parent=55 // pred_region
          %s799 = ssub.s32 128, 128
          %800 = vsyncadd %s772, %s799
          %s801 = sadd.s32 %s39, %s38
          %s802 = smul.addr %s801, 128
          %s803 = scalar_lea.hbm %s10, %s802
          %s805 = sshll.u32 %s775, 4
          %s806 = int_to_ptr.vmem [resolvable:$true] %s805
          %808 = dma.vmem_to_hbm [thread:$0]  %s806, 128, %s803, %s772
        $region80: #{tpu_custom_call.1} parent=55 // pred_fallthru
          _
        // Predicated region
        $region81: #{tpu_custom_call.1} parent=55 // pred_check
          %p809 = pneg %p318
        $region82: #{tpu_custom_call.1} parent=55 // pred_check_branch
          %811 = sbr.rel (%p809) target = $region84
        $region83: #{tpu_custom_call.1} parent=55 // pred_region
          %s813 = ssub.s32 128, 128
          %814 = vsyncadd %s777, %s813
          %s815 = sadd.s32 %s39, %s38
          %s816 = smul.addr %s815, 128
          %s817 = scalar_lea.hbm %s11, %s816
          %s819 = sshll.u32 %s780, 4
          %s820 = int_to_ptr.vmem [resolvable:$true] %s819
          %822 = dma.vmem_to_hbm [thread:$0]  %s820, 128, %s817, %s777
        $region84: #{tpu_custom_call.1} parent=55 // pred_fallthru
          _
      $region56: #{tpu_custom_call.1} parent=5 // pred_fallthru
        _
      %p823 = scmp.le.s32.totalorder 2, %s29
      // Predicated region
      $region85: #{tpu_custom_call.1} parent=5 // pred_check
        %p824 = pneg %p823
      $region86: #{tpu_custom_call.1} parent=5 // pred_check_branch
        %826 = sbr.rel (%p824) target = $region88
      $region87: #{tpu_custom_call.1} parent=5 // pred_region
        %s827 = ssub.s32 %s29, 2
        // Predicated region
        $region89: #{tpu_custom_call.1} parent=87 // pred_check
          %p828 = pneg %p268
        $region90: #{tpu_custom_call.1} parent=87 // pred_check_branch
          %830 = sbr.rel (%p828) target = $region92
        $region91: #{tpu_custom_call.1} parent=87 // pred_region
          %s831 = sand.u32 %s253, 1
          %s832 = scalar_lea.sflag [#allocation4], %s831
          %s833 = sand.u32 %s253, 1
          %s834 = smul.addr %s833, 8
          %s835 = scalar_lea.vmem [#allocation10], %s834
          %836 = dma.done %s832, 128
        $region92: #{tpu_custom_call.1} parent=87 // pred_fallthru
          _
        // Predicated region
        $region93: #{tpu_custom_call.1} parent=87 // pred_check
          %p837 = pneg %p296
        $region94: #{tpu_custom_call.1} parent=87 // pred_check_branch
          %839 = sbr.rel (%p837) target = $region96
        $region95: #{tpu_custom_call.1} parent=87 // pred_region
          %s840 = sand.u32 %s35, 1
          %s841 = scalar_lea.sflag [#allocation12], %s840
          %s842 = sand.u32 %s281, 1
          %s843 = smul.addr %s842, 8
          %s844 = scalar_lea.vmem [#allocation11], %s843
          %845 = dma.done %s841, 128
        $region96: #{tpu_custom_call.1} parent=87 // pred_fallthru
          _
        // Predicated region
        $region97: #{tpu_custom_call.1} parent=87 // pred_check
          %p846 = pneg %p324
        $region98: #{tpu_custom_call.1} parent=87 // pred_check_branch
          %848 = sbr.rel (%p846) target = $region100
        $region99: #{tpu_custom_call.1} parent=87 // pred_region
          %s849 = sand.u32 %s35, 1
          %s850 = scalar_lea.sflag [#allocation12], %s849
          %s851 = sand.u32 %s309, 1
          %s852 = smul.addr %s851, 8
          %s853 = scalar_lea.vmem [#allocation13], %s852
          %854 = dma.done %s850, 128
        $region100: #{tpu_custom_call.1} parent=87 // pred_fallthru
          _
      $region88: #{tpu_custom_call.1} parent=5 // pred_fallthru
        _
    $region6: #{tpu_custom_call.1} parent=1 // loop_footer
      %s33 = sadd.s32 1, %s29
    $region7: #{tpu_custom_call.1} parent=1 // loop_footer_branch
      %28 = sbr.rel target = $region3
    $region8: #{tpu_custom_call.1} parent=1 // loop_exit
      _
    %855 = vsyncpa [#allocation3], 1
    %s856 = scalar_lea.sflag [#allocation3], 1
    %857 = vsyncpa %s856, 1
    %858 = vsyncpa [#allocation6], 1
    %859 = vsyncpa [#allocation9], 1
    %860 = vsyncpa [#allocation4], 1
    %s861 = scalar_lea.sflag [#allocation4], 1
    %862 = vsyncpa %s861, 1
    %863 = vsyncpa [#allocation12], 1
    %s864 = scalar_lea.sflag [#allocation12], 1
    %865 = vsyncpa %s864, 1

</llo_original>
